<compile_context>
chip_gen: v6e
topology: v6e:2x2x1
jax: 0.10.0
libtpu: 0.0.40
codegen_flags: <defaults>
</compile_context>

<pallas_src>
import functools
import math

import jax
import jax.numpy as jnp
from jax import lax
from jax.experimental import pallas as pl
from jax.experimental.pallas import tpu as pltpu

_LANE = 128
_SUBLANE = 8
# Review accounting: the body can keep ~4 tile-sized f32 intermediates live
# (f32 cast of x, shifted, exp, exp*shifted) on top of the 2x pipelined input.
_TEMP_F32_COPIES = 4


def _vmem_capacity_bytes():
    try:
        cap = int(pltpu.get_tpu_info().vmem_capacity_bytes)
        if cap > 0:
            return cap
    except Exception:
        pass
    return 64 * 1024 * 1024  # conservative fallback (v7x per-TC physical VMEM)


def _vmem_limit_for(tile_elems, itemsize, vmem_cap):
    bytes_per_elem = 2 * itemsize + _TEMP_F32_COPIES * 4
    needed = bytes_per_elem * tile_elems + (2 << 20)
    if needed > vmem_cap - (4 << 20):
        # TODO(synk): tile the channel axis with an online (running max / running
        # sums) entropy for vocab-scale C instead of erroring out.
        raise ValueError(
            f"CPR block needs ~{needed >> 20} MiB VMEM but only "
            f"{vmem_cap >> 20} MiB is available on this chip")
    return int(min(vmem_cap - (2 << 20), needed + (16 << 20)))


def _entropy(x, axis):
    """Per-position softmax entropy of logits along `axis` (numerically stable)."""
    m = jnp.max(x, axis=axis, keepdims=True)
    shifted = x - m
    ex = jnp.exp(shifted)
    denom = jnp.sum(ex, axis=axis, keepdims=True)
    num = jnp.sum(ex * shifted, axis=axis, keepdims=True)
    return jnp.log(denom) - num / denom


def _store_scalar(o_ref, value):
    o_ref[...] = jnp.full(o_ref.shape, value, dtype=o_ref.dtype)


# --------------------------------------------------------------------------
# Kernels
# --------------------------------------------------------------------------
def _cpr_kernel_4d(x_ref, o_ref, *, tile_r, rows_total, ragged):
    """Block (1, C, tile_r, 128): C leads (VPU reduce), rows on sublanes, 128 lanes."""
    x = x_ref[0].astype(jnp.float32)          # (C, tile_r, 128)
    ent = _entropy(x, axis=0)                 # (1, tile_r, 128)
    _store_scalar(o_ref, jnp.sum(ent))
    if ragged:                                # mask only on the last spatial tile
        j = pl.program_id(1)

        @pl.when(j == pl.num_programs(1) - 1)
        def _():
            row = j * tile_r + lax.broadcasted_iota(jnp.int32, ent.shape, 1)
            masked = jnp.where(row < rows_total, ent, 0.0)
            _store_scalar(o_ref, jnp.sum(masked))


def _cpr_kernel_3d(x_ref, o_ref, *, tile_hw, hw_total, ragged):
    """Block (1, C, tile_hw): fallback when HW is not a multiple of 128."""
    x = x_ref[0].astype(jnp.float32)          # (C, tile_hw)
    ent = _entropy(x, axis=0)                 # (1, tile_hw)
    _store_scalar(o_ref, jnp.sum(ent))
    if ragged:
        j = pl.program_id(1)

        @pl.when(j == pl.num_programs(1) - 1)
        def _():
            col = j * tile_hw + lax.broadcasted_iota(jnp.int32, ent.shape, 1)
            masked = jnp.where(col < hw_total, ent, 0.0)
            _store_scalar(o_ref, jnp.sum(masked))


def _cpr_kernel_rows(x_ref, o_ref, *, tile_m, m_total, ragged):
    """Block (tile_m, C): C on lanes, positions on sublanes (2-D / tiny-spatial inputs)."""
    x = x_ref[...].astype(jnp.float32)        # (tile_m, C)
    ent = _entropy(x, axis=1)                 # (tile_m, 1)
    _store_scalar(o_ref, jnp.sum(ent))
    if ragged:
        i = pl.program_id(0)

        @pl.when(i == pl.num_programs(0) - 1)
        def _():
            row = i * tile_m + lax.broadcasted_iota(jnp.int32, ent.shape, 0)
            masked = jnp.where(row < m_total, ent, 0.0)
            _store_scalar(o_ref, jnp.sum(masked))


# --------------------------------------------------------------------------
# Wrapper
# --------------------------------------------------------------------------
def cpr_forward(x):
    """CPR forward: mean over positions of -sum_c softmax(x)_c * log_softmax(x)_c (axis=1)."""
    if x.ndim < 2:
        raise ValueError("CPR expects at least a 2-D (N, C, ...) input")
    N, C = int(x.shape[0]), int(x.shape[1])
    HW = int(math.prod(x.shape[2:]))
    total_positions = N * HW
    itemsize = jnp.dtype(x.dtype).itemsize

    vmem_cap = _vmem_capacity_bytes()
    bytes_per_elem = 2 * itemsize + _TEMP_F32_COPIES * 4
    max_tile_elems = max(1, (vmem_cap // 2) // bytes_per_elem)

    if HW >= _LANE and HW % _LANE == 0:
        # ---- Fast path: channel reduction on the VPU, lanes always dense. ----
        R = HW // _LANE
        x4d = x.reshape(N, C, R, _LANE)                    # free reshape (contiguous)
        tile_r = max_tile_elems // (C * _LANE)
        if tile_r >= R:
            tile_r = R                                      # full dim is always legal
        else:
            tile_r = max(_SUBLANE, (tile_r // _SUBLANE) * _SUBLANE)
            if tile_r >= R:
                tile_r = R
        grid_r = pl.cdiv(R, tile_r)
        ragged = (R % tile_r) != 0
        vmem_limit = _vmem_limit_for(C * tile_r * _LANE, itemsize, vmem_cap)

        kernel = functools.partial(_cpr_kernel_4d, tile_r=tile_r, rows_total=R,
                                   ragged=ragged)
        partials = pl.pallas_call(
            kernel,
            out_shape=jax.ShapeDtypeStruct((N, grid_r, 1, 1), jnp.float32),
            grid_spec=pltpu.PrefetchScalarGridSpec(
                num_scalar_prefetch=0,
                grid=(N, grid_r),
                in_specs=[pl.BlockSpec((1, C, tile_r, _LANE),
                                       lambda n, j: (n, 0, j, 0))],
                out_specs=pl.BlockSpec((1, 1, 1, 1), lambda n, j: (n, j, 0, 0)),
            ),
            compiler_params=pltpu.CompilerParams(
                dimension_semantics=("parallel", "parallel"),
                vmem_limit_bytes=vmem_limit,
            ),
            cost_estimate=pl.CostEstimate(
                flops=6 * N * C * HW,
                transcendentals=N * C * HW,
                bytes_accessed=N * C * HW * itemsize + N * grid_r * 4,
            ),
        )(x4d)

    elif HW >= _LANE:
        # ---- Ragged spatial extent: keep 3-D layout, mask last tile only. ----
        x3d = x.reshape(N, C, HW)
        cap128 = (HW // _LANE) * _LANE
        tile_hw = max(_LANE, ((max_tile_elems // C) // _LANE) * _LANE)
        tile_hw = min(tile_hw, cap128)
        grid_hw = pl.cdiv(HW, tile_hw)
        ragged = (HW % tile_hw) != 0
        vmem_limit = _vmem_limit_for(C * tile_hw, itemsize, vmem_cap)

        kernel = functools.partial(_cpr_kernel_3d, tile_hw=tile_hw, hw_total=HW,
                                   ragged=ragged)
        partials = pl.pallas_call(
            kernel,
            out_shape=jax.ShapeDtypeStruct((N, grid_hw, 1, 1), jnp.float32),
            grid_spec=pltpu.PrefetchScalarGridSpec(
                num_scalar_prefetch=0,
                grid=(N, grid_hw),
                in_specs=[pl.BlockSpec((1, C, tile_hw), lambda n, j: (n, 0, j))],
                out_specs=pl.BlockSpec((1, 1, 1, 1), lambda n, j: (n, j, 0, 0)),
            ),
            compiler_params=pltpu.CompilerParams(
                dimension_semantics=("parallel", "parallel"),
                vmem_limit_bytes=vmem_limit,
            ),
            cost_estimate=pl.CostEstimate(
                flops=6 * N * C * HW,
                transcendentals=N * C * HW,
                bytes_accessed=N * C * HW * itemsize + N * grid_hw * 4,
            ),
        )(x3d)

    else:
        # ---- HW < 128 (incl. plain 2-D logits): C on lanes, positions on sublanes. ----
        if x.ndim > 2:
            xm = jnp.moveaxis(x.reshape(N, C, HW), 1, 2).reshape(N * HW, C)
        else:
            xm = x
        M = N * HW
        tile_m = max_tile_elems // max(C, 1)
        if tile_m >= M:
            tile_m = M
        else:
            tile_m = max(_SUBLANE, (tile_m // _SUBLANE) * _SUBLANE)
            if tile_m >= M:
                tile_m = M
        grid_m = pl.cdiv(M, tile_m)
        ragged = (M % tile_m) != 0
        vmem_limit = _vmem_limit_for(tile_m * C, itemsize, vmem_cap)

        kernel = functools.partial(_cpr_kernel_rows, tile_m=tile_m, m_total=M,
                                   ragged=ragged)
        partials = pl.pallas_call(
            kernel,
            out_shape=jax.ShapeDtypeStruct((grid_m, 1, 1), jnp.float32),
            grid_spec=pltpu.PrefetchScalarGridSpec(
                num_scalar_prefetch=0,
                grid=(grid_m,),
                in_specs=[pl.BlockSpec((tile_m, C), lambda i: (i, 0))],
                out_specs=pl.BlockSpec((1, 1, 1), lambda i: (i, 0, 0)),
            ),
            compiler_params=pltpu.CompilerParams(
                dimension_semantics=("parallel",),
                vmem_limit_bytes=vmem_limit,
            ),
            cost_estimate=pl.CostEstimate(
                flops=6 * M * C,
                transcendentals=M * C,
                bytes_accessed=M * C * itemsize + grid_m * 4,
            ),
        )(xm)

    # Mean over all N*H*W positions (partials are already f32).
    return jnp.sum(partials) / jnp.float32(total_positions)


def _cpr_reference(x):
    logp = jax.nn.log_softmax(x, axis=1)
    p = jax.nn.softmax(x, axis=1)
    b = -(p * logp).sum(axis=1)
    return b.mean()


if __name__ == "__main__":
    key = jax.random.PRNGKey(0)
    k1, k2 = jax.random.split(key)

    # Primary NCHW case consistent with the module's dim=1 softmax.
    x_img = jax.random.normal(k1, (2, 4, 16, 16), dtype=jnp.float32)
    got = jax.block_until_ready(cpr_forward(x_img))
    want = jax.block_until_ready(_cpr_reference(x_img))
    assert jnp.allclose(got, want, rtol=1e-5, atol=1e-5), (got, want)

    # Plain 2-D logits case (exercises the C-on-lanes path).
    x_2d = jax.random.normal(k2, (8, 32), dtype=jnp.float32)
    got2 = jax.block_until_ready(cpr_forward(x_2d))
    want2 = jax.block_until_ready(_cpr_reference(x_2d))
    assert jnp.allclose(got2, want2, rtol=1e-5, atol=1e-5), (got2, want2)

    print("KERNEL_OK")
</pallas_src>

<mosaic_0001>
module attributes {stable_mosaic.version = 11 : i64} {
  func.func @_cpr_kernel_4d(%arg0: i32, %arg1: i32, %arg2: memref<1x4x2x128xf32, #tpu.memory_space<vmem>>, %arg3: memref<1x1x1x1xf32, #tpu.memory_space<vmem>>) attributes {dimension_semantics = [#tpu.dimension_semantics<parallel>, #tpu.dimension_semantics<parallel>], iteration_bounds = array<i64: 2, 1>, scalar_prefetch = 0 : i64, scratch_operands = 0 : i64, tpu.core_type = #tpu.core_type<tc>, window_params = [{transform_indices = @transform_0, window_bounds = array<i64: 1, 4, 2, 128>}, {transform_indices = @transform_1, window_bounds = array<i64: 1, 1, 1, 1>}]} {
    %c0 = arith.constant 0 : index
    %c0_0 = arith.constant 0 : index
    %c0_1 = arith.constant 0 : index
    %c0_2 = arith.constant 0 : index
    %0 = vector.load %arg2[%c0, %c0_0, %c0_1, %c0_2] : memref<1x4x2x128xf32, #tpu.memory_space<vmem>>, vector<1x4x2x128xf32>
    %1 = vector.shape_cast %0 : vector<1x4x2x128xf32> to vector<4x2x128xf32>
    %cst = arith.constant dense<0xFF800000> : vector<2x128xf32>
    %2 = vector.multi_reduction <maximumf>, %1, %cst [0] : vector<4x2x128xf32> to vector<2x128xf32>
    %3 = vector.shape_cast %2 : vector<2x128xf32> to vector<1x2x128xf32>
    %4 = vector.broadcast %3 : vector<1x2x128xf32> to vector<4x2x128xf32>
    %5 = arith.subf %1, %4 : vector<4x2x128xf32>
    %6 = math.exp %5 : vector<4x2x128xf32>
    %cst_3 = arith.constant dense<0.000000e+00> : vector<2x128xf32>
    %7 = vector.multi_reduction <add>, %6, %cst_3 [0] : vector<4x2x128xf32> to vector<2x128xf32>
    %8 = vector.shape_cast %7 : vector<2x128xf32> to vector<1x2x128xf32>
    %9 = arith.mulf %6, %5 : vector<4x2x128xf32>
    %cst_4 = arith.constant dense<0.000000e+00> : vector<2x128xf32>
    %10 = vector.multi_reduction <add>, %9, %cst_4 [0] : vector<4x2x128xf32> to vector<2x128xf32>
    %11 = vector.shape_cast %10 : vector<2x128xf32> to vector<1x2x128xf32>
    %12 = math.log %8 : vector<1x2x128xf32>
    %13 = arith.divf %11, %8 : vector<1x2x128xf32>
    %14 = arith.subf %12, %13 : vector<1x2x128xf32>
    %15 = vector.shape_cast %14 : vector<1x2x128xf32> to vector<1x1x2x128xf32>
    %cst_5 = arith.constant dense<0.000000e+00> : vector<1xf32>
    %16 = vector.multi_reduction <add>, %15, %cst_5 [1, 2, 3] : vector<1x1x2x128xf32> to vector<1xf32>
    %17 = vector.shape_cast %16 : vector<1xf32> to vector<1x1x1x1xf32>
    %18 = vector.extract %17[0, 0, 0, 0] : f32 from vector<1x1x1x1xf32>
    %19 = vector.broadcast %18 : f32 to vector<1x1x1x1xf32>
    %c0_6 = arith.constant 0 : index
    %c0_7 = arith.constant 0 : index
    %c0_8 = arith.constant 0 : index
    %c0_9 = arith.constant 0 : index
    %20 = vector.load %arg3[%c0_6, %c0_7, %c0_8, %c0_9] : memref<1x1x1x1xf32, #tpu.memory_space<vmem>>, vector<1x1x1x1xf32>
    tpu.vector_store %arg3[%c0_6, %c0_7, %c0_8, %c0_9], %19 {strides = array<i32>} : memref<1x1x1x1xf32, #tpu.memory_space<vmem>>, vector<1x1x1x1xf32>,
    return
  }
  func.func @transform_0(%arg0: i32, %arg1: i32) -> (i32, i32, i32, i32) {
    %c0_i32 = arith.constant 0 : i32
    %c0_i32_0 = arith.constant 0 : i32
    %c0_i32_1 = arith.constant 0 : i32
    return %arg0, %c0_i32, %arg1, %c0_i32_0 : i32, i32, i32, i32
  }
  func.func @transform_1(%arg0: i32, %arg1: i32) -> (i32, i32, i32, i32) {
    %c0_i32 = arith.constant 0 : i32
    %c0_i32_0 = arith.constant 0 : i32
    %c0_i32_1 = arith.constant 0 : i32
    return %arg0, %arg1, %c0_i32, %c0_i32_0 : i32, i32, i32, i32
  }
}

</mosaic_0001>

<llo_original>
// kernel: tpu_custom_call.1
$region0: #{tpu_custom_call.1}
  #allocation0 [shape = 'u32[]', space=smem, size = 0x4, offset = 0x4, fixed_abs, tag = 'smem constant byte address 0x4 - core index']
  #allocation1 [shape = 'u32[144,128]{1,0:T(1,128)}', space=vmem, size = 0x12000, scoped, tag = 'internal scratch']
  %s0 = inlined_call_operand.hbm [shape: f32[2,4,2,128], index: 0, kind: input, shape index: {}]
  %s1 = inlined_call_operand.vmem [shape: f32[2,1,1,1], index: 1, kind: output, shape index: {}]
  %s2 = sld [smem:[#allocation0]]
  $region41: #{tpu_custom_call.1} parent=0
    _
  %s4 = ssub.s32 1, %s2
  %s5 = scalar_select 0, %s4, %s2
  $region1: #{tpu_custom_call.1} parent=0
    #allocation2 [shape = 'u8[8192]{0}', space=vmem, size = 0x2000, scoped, tag = 'input window, operand 0']
    #allocation3 [shape = 's32[2]{0}', space=sflag, size = 0x8, scoped, tag = 'scoped memory for tpu_custom_call.1']
    %6 = vsyncpa [#allocation3], 0
    %s7 = scalar_lea.sflag [#allocation3], 1
    %8 = vsyncpa %s7, 0
    loop: start=0, step=1, limit=4
    $region2: #{tpu_custom_call.1} parent=1 // loop_pre_header
      _
    $region3: #{tpu_custom_call.1} parent=1 // loop_header
      %s10 = sphi 0, %s14
      %p11 = scmp.ge.s32.totalorder %s10, 4
      %s17 = sphi 0, %s29
      %s18 = sphi 0, %s25
      %s19 = sphi 0, %s17
      %s20 = sphi 0, %s18
      %s21 = sphi 0, %s19
      %s22 = sphi 0, %s20
      %s34 = sphi 0, %s36
      %s37 = sphi 0, %s34
      %s38 = sphi 0, %s37
      %s54 = sphi 0, %s38
      %s62 = sphi 0, %s64
      %s65 = sphi 0, %s62
      %s66 = sphi 0, %s65
      %s82 = sphi 0, %s66
    $region4: #{tpu_custom_call.1} parent=1 // loop_header_branch
      %13 = sbr.rel (%p11) target = $region8
    $region5: #{tpu_custom_call.1} parent=1 // loop_body
      %s15 = ssub.s32 %s10, 1
      %s16 = ssub.s32 %s10, 2
      %s23 = sadd.s32 1, %s18
      %p24 = scmp.ge.s32.totalorder %s23, 1
      %s25 = scalar_select %p24, 0, %s23
      %s26 = sadd.s32 1, %s17
      %s27 = scalar_select %p24, %s26, %s17
      %p28 = scmp.ge.s32.totalorder %s27, 2
      %s29 = scalar_select %p28, 0, %s27
      %s30 = ssub.s32 %s17, %s29
      %s31 = ssub.s32 %s18, %s25
      %s32 = sor.u32 %s30, %s31
      %p33 = scmp.eq.s32.totalorder %s32, 0
      %s35 = sadd.s32 %s34, 1
      %s36 = scalar_select %p33, %s34, %s35
      %p39 = pneg %p33
      %p40 = scmp.eq.s32.totalorder %s10, 1
      %p41 = por %p39, %p40
      %p42 = scmp.ne.s32.totalorder %s34, %s37
      %p43 = scmp.eq.s32.totalorder %s10, 0
      %p44 = por %p42, %p43
      %p45 = scmp.ne.s32.totalorder %s34, %s37
      %p46 = scmp.eq.s32.totalorder %s15, 1
      %p47 = por %p45, %p46
      %p48 = scmp.ne.s32.totalorder %s37, %s38
      %p49 = scmp.eq.s32.totalorder %s15, 0
      %p50 = por %p48, %p49
      %p51 = scmp.ne.s32.totalorder %s37, %s38
      %p52 = scmp.eq.s32.totalorder %s16, 1
      %p53 = por %p51, %p52
      %p55 = scmp.ne.s32.totalorder %s38, %s54
      %p56 = scmp.eq.s32.totalorder %s16, 0
      %p57 = por %p55, %p56
      %s58 = ssub.s32 %s17, %s29
      %s59 = ssub.s32 %s18, %s25
      %s60 = sor.u32 %s58, %s59
      %p61 = scmp.eq.s32.totalorder %s60, 0
      %s63 = sadd.s32 %s62, 1
      %s64 = scalar_select %p61, %s62, %s63
      %p67 = pneg %p61
      %p68 = scmp.eq.s32.totalorder %s10, 1
      %p69 = por %p67, %p68
      %p70 = scmp.ne.s32.totalorder %s62, %s65
      %p71 = scmp.eq.s32.totalorder %s10, 0
      %p72 = por %p70, %p71
      %p73 = scmp.ne.s32.totalorder %s62, %s65
      %p74 = scmp.eq.s32.totalorder %s15, 1
      %p75 = por %p73, %p74
      %p76 = scmp.ne.s32.totalorder %s65, %s66
      %p77 = scmp.eq.s32.totalorder %s15, 0
      %p78 = por %p76, %p77
      %p79 = scmp.ne.s32.totalorder %s65, %s66
      %p80 = scmp.eq.s32.totalorder %s16, 1
      %p81 = por %p79, %p80
      %p83 = scmp.ne.s32.totalorder %s66, %s82
      %p84 = scmp.eq.s32.totalorder %s16, 0
      %p85 = por %p83, %p84
      %p86 = scmp.le.s32.totalorder 1, %s10
      %p87 = scmp.lt.s32.totalorder %s10, 3
      %p88 = pnand %p86, %p87
      %p89 = pneg %p88
      // Predicated region
      $region9: #{tpu_custom_call.1} parent=5 // pred_check
        _
      $region10: #{tpu_custom_call.1} parent=5 // pred_check_branch
        %91 = sbr.rel (%p88) target = $region12
      $region11: #{tpu_custom_call.1} parent=5 // pred_region
        %s92 = ssub.s32 %s10, 1
      $region12: #{tpu_custom_call.1} parent=5 // pred_fallthru
        _
      %p93 = scmp.lt.s32.totalorder %s10, 2
      // Predicated region
      $region13: #{tpu_custom_call.1} parent=5 // pred_check
        %p94 = pneg %p93
      $region14: #{tpu_custom_call.1} parent=5 // pred_check_branch
        %96 = sbr.rel (%p94) target = $region16
      $region15: #{tpu_custom_call.1} parent=5 // pred_region
        // Predicated region
        $region17: #{tpu_custom_call.1} parent=15 // pred_check
          %p97 = pneg %p44
        $region18: #{tpu_custom_call.1} parent=15 // pred_check_branch
          %99 = sbr.rel (%p97) target = $region20
        $region19: #{tpu_custom_call.1} parent=15 // pred_region
          %s100 = sand.u32 %s34, 1
          %s101 = scalar_lea.sflag [#allocation3], %s100
          %s102 = sand.u32 %s34, 1
          %s103 = smul.addr %s102, 8
          %s104 = scalar_lea.vmem [#allocation2], %s103
          %s106 = ssub.s32 128, 128
          %107 = vsyncadd %s101, %s106
          %s108 = smul.addr %s17, 4
          %s109 = sadd.s32 %s18, %s108
          %s110 = smul.addr %s109, 32
          %s111 = scalar_lea.hbm %s0, %s110
          %s112 = sshll.u32 %s104, 4
          %s113 = int_to_ptr.vmem [resolvable:$true] %s112
          %118 = dma.hbm_to_vmem [thread:$0]  %s111, 128, %s113, %s101, 32, 32, 2
        $region20: #{tpu_custom_call.1} parent=15 // pred_fallthru
          _
      $region16: #{tpu_custom_call.1} parent=5 // pred_fallthru
        _
      %p119 = scmp.le.s32.totalorder 1, %s10
      %p120 = scmp.lt.s32.totalorder %s10, 3
      %p121 = pnand %p119, %p120
      %p122 = pneg %p121
      // Predicated region
      $region21: #{tpu_custom_call.1} parent=5 // pred_check
        _
      $region22: #{tpu_custom_call.1} parent=5 // pred_check_branch
        %124 = sbr.rel (%p121) target = $region24
      $region23: #{tpu_custom_call.1} parent=5 // pred_region
        %s125 = ssub.s32 %s10, 1
        %s126 = sand.u32 %s37, 1
        %s127 = scalar_lea.sflag [#allocation3], %s126
        %s128 = sand.u32 %s37, 1
        %s129 = smul.addr %s128, 8
        %s130 = scalar_lea.vmem [#allocation2], %s129
        // Predicated region
        $region25: #{tpu_custom_call.1} parent=23 // pred_check
          %p131 = pneg %p50
        $region26: #{tpu_custom_call.1} parent=23 // pred_check_branch
          %133 = sbr.rel (%p131) target = $region28
        $region27: #{tpu_custom_call.1} parent=23 // pred_region
          %134 = dma.done %s127, 128
        $region28: #{tpu_custom_call.1} parent=23 // pred_fallthru
          _
        %s135 = sand.u32 %s37, 1
        %s136 = scalar_lea.sflag [#allocation3], %s135
        %s137 = sand.u32 %s37, 1
        %s138 = smul.addr %s137, 8
        %s139 = scalar_lea.vmem [#allocation2], %s138
        %p140 = pneg %p50
        %p141 = pneg %p47
        %p142 = pneg %p78
        %p143 = pneg %p75
        %p144 = scmp.lt.s32.totalorder %s19, 1
        %s145 = scalar_select %p144, %s19, 1
        %p146 = scmp.lt.s32.totalorder %s20, 0
        %s147 = scalar_select %p146, %s20, 0
        %s148 = sadd.s32 %s147, %s145
        %s149 = scalar_lea.vmem %s1, %s148
        %p150 = scmp.lt.s32.totalorder %s19, 1
        %s151 = scalar_select %p150, %s19, 1
        %p152 = scmp.lt.s32.totalorder %s20, 0
        %s153 = scalar_select %p152, %s20, 0
        %s154 = sadd.s32 %s153, %s151
        %s155 = scalar_lea.vmem %s1, %s154
        %v156 = vld [vmem:[%s130] sm:$0x3]
        %v157 = vld [vmem:[%s130 + $0x2] sm:$0x3]
        %v158 = vld [vmem:[%s130 + $0x4] sm:$0x3]
        %v159 = vld [vmem:[%s130 + $0x6] sm:$0x3]
        %vm160 = vcmask 1041408
        %v161 = vsel %vm160, %v156, -inf
        %v162 = vsel %vm160, %v157, -inf
        %v163 = vsel %vm160, %v158, -inf
        %v164 = vsel %vm160, %v159, -inf
        %v165 = vmax.f32 %v161, %v162
        %v166 = vmax.f32 %v163, %v164
        %v167 = vmax.f32 %v165, %v166
        %v168 = vsub.f32 %v156, %v167
        %v169 = vsub.f32 %v157, %v167
        %v170 = vsub.f32 %v158, %v167
        %v171 = vsub.f32 %v159, %v167
        %v172 = vmul.f32 %v168, 1.442695
        %v173 = vpow.pop %v172
        %v174 = vmul.f32 %v169, 1.442695
        %v175 = vpow.pop %v174
        %v176 = vmul.f32 %v170, 1.442695
        %v177 = vpow.pop %v176
        %v178 = vmul.f32 %v171, 1.442695
        %v179 = vpow.pop %v178
        %v180 = vsel %vm160, %v173, 0.0
        %v181 = vsel %vm160, %v175, 0.0
        %v182 = vadd.f32 %v180, %v181
        %v183 = vsel %vm160, %v177, 0.0
        %v184 = vadd.f32 %v182, %v183
        %v185 = vsel %vm160, %v179, 0.0
        %v186 = vadd.f32 %v184, %v185
        %v187 = vmul.f32 %v173, %v168
        %v188 = vmul.f32 %v175, %v169
        %v189 = vmul.f32 %v177, %v170
        %v190 = vmul.f32 %v179, %v171
        %v191 = vsel %vm160, %v187, 0.0
        %v192 = vsel %vm160, %v188, 0.0
        %v193 = vadd.f32 %v191, %v192
        %v194 = vsel %vm160, %v189, 0.0
        %v195 = vadd.f32 %v193, %v194
        %v196 = vsel %vm160, %v190, 0.0
        %v197 = vadd.f32 %v195, %v196
        %v198 = vlog2.pop %v186
        %v199 = vmul.f32 %v198, 0.6931472
        %v200 = vrcp.pop %v186
        %v201 = vmul.f32 %v197, %v200
        %v202 = vsub.f32 %v199, %v201
        %v203 = vsel %vm160, %v202, 0.0
        %204 = vadd.xlane.f32.xlu0 %v203
        %v205 = vpop.xlane.xlu0 %204
        %v206 = vrot.slane %v205, 4
        %v207 = vadd.f32 %v205, %v206
        %v208 = vrot.slane %v207, 2
        %v209 = vadd.f32 %v207, %v208
        %v210 = vrot.slane %v209, 1
        %v211 = vadd.f32 %v209, %v210
        %s212 = vtos %v211
        %v213 = vstv %s212
        %vm214 = vcmask 0
        %215 = vst.msk [vmem:[%s155] sm:$0x1] %vm214, %v213
        %p216 = scmp.lt.s32.totalorder %s19, 1
        %s217 = scalar_select %p216, %s19, 1
        %p218 = scmp.lt.s32.totalorder %s20, 0
        %s219 = scalar_select %p218, %s20, 0
        %s220 = sadd.s32 %s219, %s217
        %s221 = scalar_lea.vmem %s1, %s220
        // Predicated region
        $region29: #{tpu_custom_call.1} parent=23 // pred_check
          %p222 = pneg %p75
        $region30: #{tpu_custom_call.1} parent=23 // pred_check_branch
          %224 = sbr.rel (%p222) target = $region32
        $region31: #{tpu_custom_call.1} parent=23 // pred_region
          _
        $region32: #{tpu_custom_call.1} parent=23 // pred_fallthru
          _
      $region24: #{tpu_custom_call.1} parent=5 // pred_fallthru
        _
      %p225 = scmp.le.s32.totalorder 2, %s10
      // Predicated region
      $region33: #{tpu_custom_call.1} parent=5 // pred_check
        %p226 = pneg %p225
      $region34: #{tpu_custom_call.1} parent=5 // pred_check_branch
        %228 = sbr.rel (%p226) target = $region36
      $region35: #{tpu_custom_call.1} parent=5 // pred_region
        %s229 = ssub.s32 %s10, 2
        // Predicated region
        $region37: #{tpu_custom_call.1} parent=35 // pred_check
          %p230 = pneg %p81
        $region38: #{tpu_custom_call.1} parent=35 // pred_check_branch
          %232 = sbr.rel (%p230) target = $region40
        $region39: #{tpu_custom_call.1} parent=35 // pred_region
          %p233 = scmp.lt.s32.totalorder %s21, 1
          %s234 = scalar_select %p233, %s21, 1
          %p235 = scmp.lt.s32.totalorder %s22, 0
          %s236 = scalar_select %p235, %s22, 0
          %s237 = sadd.s32 %s236, %s234
          %s238 = scalar_lea.vmem %s1, %s237
        $region40: #{tpu_custom_call.1} parent=35 // pred_fallthru
          _
      $region36: #{tpu_custom_call.1} parent=5 // pred_fallthru
        _
    $region6: #{tpu_custom_call.1} parent=1 // loop_footer
      %s14 = sadd.s32 1, %s10
    $region7: #{tpu_custom_call.1} parent=1 // loop_footer_branch
      %9 = sbr.rel target = $region3
    $region8: #{tpu_custom_call.1} parent=1 // loop_exit
      _
    %239 = vsyncpa [#allocation3], 1
    %s240 = scalar_lea.sflag [#allocation3], 1
    %241 = vsyncpa %s240, 1

</llo_original>
